<compile_context>
chip_gen: v7x
topology: tpu7x:2x2x1
jax: 0.10.0
libtpu: 0.0.40
codegen_flags: <defaults>
</compile_context>

<pallas_src>
import functools

import jax
import jax.numpy as jnp
import numpy as np
from jax.experimental import pallas as pl
from jax.experimental.pallas import tpu as pltpu


def _round_up(x, m):
    return (x + m - 1) // m * m


def _dense_block_kernel(x_ref, w_ref, b_ref, o_ref, *, scale, neg_slope):
    # Fused: matmul (MXU, f32 accumulation) + wscale affine + leaky-relu epilogue.
    y = jnp.dot(x_ref[...], w_ref[...], preferred_element_type=jnp.float32)
    y = y * scale + b_ref[...]                   # bias already pre-scaled by lr_mult
    y = jnp.where(y >= 0, y, neg_slope * y)      # LeakyReLU(0.2) / identity
    o_ref[...] = y.astype(o_ref.dtype)


def dense_block(x, weight, bias, *, wscale_gain=float(np.sqrt(2.0)),
                wscale_lr_multiplier=0.01, activation_type="lrelu",
                tm=None, tn=None, compute_dtype=None):
    """StyleGAN DenseBlock forward.

    x:      [B, Cin]
    weight: [Cout, Cin]   (PyTorch nn.Linear layout)
    bias:   [Cout]
    compute_dtype: optional dtype for the matmul operands (e.g. jnp.bfloat16 for
        2x MXU throughput); accumulation and epilogue stay in float32.
    """
    B, Cin = x.shape
    Cout, Cin_w = weight.shape
    assert Cin_w == Cin and bias.shape == (Cout,)

    if activation_type == "lrelu":
        neg_slope = 0.2
    elif activation_type == "linear":
        neg_slope = 1.0  # leaky-relu with slope 1 == identity
    else:
        raise NotImplementedError(f"Unsupported activation: {activation_type}")

    fan_in = Cin * 1 * 1  # kernel_size = 1 in WScaleLayer for DenseBlock
    scale = float(wscale_gain / np.sqrt(fan_in) * wscale_lr_multiplier)

    out_dtype = x.dtype
    cdt = jnp.dtype(compute_dtype) if compute_dtype is not None else jnp.dtype(x.dtype)
    pack = 16 if cdt == jnp.bfloat16 else 8   # sublane packing of the compute dtype
    lane = 128

    # Pad channels to lane-dense multiples of 128 (zero padding is exact for the dot).
    Cin_p = _round_up(Cin, lane)
    Cout_p = _round_up(Cout, lane)
    if tn is None:
        # Keep the weight fully resident for typical StyleGAN sizes; tile N if huge
        # so the resident working set stays inside v7x's 64 MiB VMEM.
        tn = Cout_p if Cout_p <= 2048 else 512
    Cout_p = _round_up(Cout_p, tn)

    if tm is None:
        # One big M tile (up to 512 rows) instead of 8-row slivers.
        tm = min(_round_up(B, pack), 512)
    B_p = _round_up(B, tm)

    # NOTE: for production, precompute/cache the transposed+padded weight once
    # outside the per-call path (or jit this wrapper) instead of redoing it here.
    x_p = jnp.pad(x, ((0, B_p - B), (0, Cin_p - Cin))).astype(cdt)
    w_t = jnp.pad(weight, ((0, Cout_p - Cout), (0, Cin_p - Cin))).T.astype(cdt)
    b2d = jnp.pad((bias * wscale_lr_multiplier).astype(jnp.float32),
                  (0, Cout_p - Cout)).reshape(1, Cout_p)

    kernel = functools.partial(_dense_block_kernel, scale=scale,
                               neg_slope=float(neg_slope))

    grid = (B_p // tm, Cout_p // tn)
    out = pl.pallas_call(
        kernel,
        out_shape=jax.ShapeDtypeStruct((B_p, Cout_p), out_dtype),
        grid_spec=pltpu.PrefetchScalarGridSpec(
            num_scalar_prefetch=0,
            grid=grid,
            in_specs=[
                pl.BlockSpec((tm, Cin_p), lambda i, j: (i, 0)),   # x row tile
                pl.BlockSpec((Cin_p, tn), lambda i, j: (0, j)),   # weight column tile
                pl.BlockSpec((1, tn), lambda i, j: (0, j)),       # bias tile
            ],
            out_specs=pl.BlockSpec((tm, tn), lambda i, j: (i, j)),
        ),
        compiler_params=pltpu.CompilerParams(
            dimension_semantics=("parallel", "parallel")),
    )(x_p, w_t, b2d)

    return out[:B, :Cout]


def _reference(x, weight, bias, *, wscale_gain=float(np.sqrt(2.0)),
               wscale_lr_multiplier=0.01):
    fan_in = x.shape[-1]
    scale = wscale_gain / np.sqrt(fan_in) * wscale_lr_multiplier
    y = x @ weight.T
    y = y * scale + bias.reshape(1, -1) * wscale_lr_multiplier
    return jnp.where(y >= 0, y, 0.2 * y)


if __name__ == "__main__":
    key = jax.random.PRNGKey(0)
    kx, kw, kb = jax.random.split(key, 3)

    batch, in_channels, out_channels = 8, 32, 64
    x = jax.random.normal(kx, (batch, in_channels), dtype=jnp.float32)
    weight = jax.random.normal(kw, (out_channels, in_channels), dtype=jnp.float32)
    # WScaleLayer.bias initializes to zeros; use small random values so the bias
    # path is actually exercised.
    bias = 0.1 * jax.random.normal(kb, (out_channels,), dtype=jnp.float32)

    # f32 path (exact vs. reference)
    out = jax.block_until_ready(dense_block(x, weight, bias))
    ref = _reference(x, weight, bias)
    np.testing.assert_allclose(np.asarray(out), np.asarray(ref),
                               rtol=1e-5, atol=1e-5)

    # bf16 compute path (f32 accumulation) — looser tolerance.
    out_bf16 = jax.block_until_ready(
        dense_block(x, weight, bias, compute_dtype=jnp.bfloat16))
    np.testing.assert_allclose(np.asarray(out_bf16), np.asarray(ref),
                               rtol=2e-2, atol=1e-2)

    # Odd shapes: exercises zero-padding, a multi-step M grid, and output slicing.
    kx2, kw2, kb2 = jax.random.split(jax.random.PRNGKey(1), 3)
    B2, Cin2, Cout2 = 300, 96, 200
    x2 = jax.random.normal(kx2, (B2, Cin2), dtype=jnp.float32)
    w2 = jax.random.normal(kw2, (Cout2, Cin2), dtype=jnp.float32)
    b2 = 0.1 * jax.random.normal(kb2, (Cout2,), dtype=jnp.float32)
    out2 = jax.block_until_ready(dense_block(x2, w2, b2, tm=128))
    ref2 = _reference(x2, w2, b2)
    np.testing.assert_allclose(np.asarray(out2), np.asarray(ref2),
                               rtol=1e-5, atol=1e-5)

    print("KERNEL_OK")
</pallas_src>

<mosaic_0001>
module attributes {stable_mosaic.version = 11 : i64} {
  func.func @_dense_block_kernel(%arg0: i32, %arg1: i32, %arg2: memref<8x128xf32, #tpu.memory_space<vmem>>, %arg3: memref<128x128xf32, #tpu.memory_space<vmem>>, %arg4: memref<1x128xf32, #tpu.memory_space<vmem>>, %arg5: memref<8x128xf32, #tpu.memory_space<vmem>>) attributes {dimension_semantics = [#tpu.dimension_semantics<parallel>, #tpu.dimension_semantics<parallel>], iteration_bounds = array<i64: 1, 1>, scalar_prefetch = 0 : i64, scratch_operands = 0 : i64, tpu.core_type = #tpu.core_type<tc>, window_params = [{transform_indices = @transform_0, window_bounds = array<i64: 8, 128>}, {transform_indices = @transform_1, window_bounds = array<i64: 128, 128>}, {transform_indices = @transform_2, window_bounds = array<i64: 1, 128>}, {transform_indices = @transform_3, window_bounds = array<i64: 8, 128>}]} {
    %c0 = arith.constant 0 : index
    %c0_0 = arith.constant 0 : index
    %0 = vector.load %arg2[%c0, %c0_0] : memref<8x128xf32, #tpu.memory_space<vmem>>, vector<8x128xf32>
    %c0_1 = arith.constant 0 : index
    %c0_2 = arith.constant 0 : index
    %1 = vector.load %arg3[%c0_1, %c0_2] : memref<128x128xf32, #tpu.memory_space<vmem>>, vector<128x128xf32>
    %cst = arith.constant dense<0.000000e+00> : vector<8x128xf32>
    %2 = tpu.matmul %0, %1, %cst {dimension_numbers = #tpu.dot_dimension_numbers<[1], [0], [0], [1], [0, 0, 1, 1], [], []>} : vector<8x128xf32>, vector<128x128xf32>, vector<8x128xf32> -> vector<8x128xf32>
    %cst_3 = arith.constant 2.500000e-03 : f32
    %3 = vector.broadcast %cst_3 : f32 to vector<8x128xf32>
    %4 = arith.mulf %2, %3 : vector<8x128xf32>
    %c0_4 = arith.constant 0 : index
    %c0_5 = arith.constant 0 : index
    %5 = vector.load %arg4[%c0_4, %c0_5] : memref<1x128xf32, #tpu.memory_space<vmem>>, vector<1x128xf32>
    %6 = vector.broadcast %5 : vector<1x128xf32> to vector<8x128xf32>
    %7 = arith.addf %4, %6 : vector<8x128xf32>
    %cst_6 = arith.constant 0.000000e+00 : f32
    %8 = vector.broadcast %cst_6 : f32 to vector<8x128xf32>
    %9 = arith.cmpf oge, %7, %8 : vector<8x128xf32>
    %cst_7 = arith.constant 2.000000e-01 : f32
    %10 = vector.broadcast %cst_7 : f32 to vector<8x128xf32>
    %11 = arith.mulf %10, %7 : vector<8x128xf32>
    %12 = arith.select %9, %7, %11 : vector<8x128xi1>, vector<8x128xf32>
    %c0_8 = arith.constant 0 : index
    %c0_9 = arith.constant 0 : index
    %13 = vector.load %arg5[%c0_8, %c0_9] : memref<8x128xf32, #tpu.memory_space<vmem>>, vector<8x128xf32>
    tpu.vector_store %arg5[%c0_8, %c0_9], %12 {strides = array<i32>} : memref<8x128xf32, #tpu.memory_space<vmem>>, vector<8x128xf32>,
    return
  }
  func.func @transform_0(%arg0: i32, %arg1: i32) -> (i32, i32) {
    %c0_i32 = arith.constant 0 : i32
    %c0_i32_0 = arith.constant 0 : i32
    return %arg0, %c0_i32 : i32, i32
  }
  func.func @transform_1(%arg0: i32, %arg1: i32) -> (i32, i32) {
    %c0_i32 = arith.constant 0 : i32
    %c0_i32_0 = arith.constant 0 : i32
    return %c0_i32, %arg1 : i32, i32
  }
  func.func @transform_2(%arg0: i32, %arg1: i32) -> (i32, i32) {
    %c0_i32 = arith.constant 0 : i32
    %c0_i32_0 = arith.constant 0 : i32
    return %c0_i32, %arg1 : i32, i32
  }
  func.func @transform_3(%arg0: i32, %arg1: i32) -> (i32, i32) {
    %c0_i32 = arith.constant 0 : i32
    return %arg0, %arg1 : i32, i32
  }
}

</mosaic_0001>

<llo_original>
// kernel: tpu_custom_call.1
$region0: #{tpu_custom_call.1}
  #allocation0 [shape = 'u32[]', space=smem, size = 0x4, offset = 0x4, fixed_abs, tag = 'smem constant byte address 0x4 - core index']
  #allocation1 [shape = 'u32[144,128]{1,0:T(1,128)}', space=vmem, size = 0x12000, scoped, tag = 'internal scratch']
  %s0 = inlined_call_operand.hbm [shape: f32[8,128], index: 0, kind: input, shape index: {}]
  %s1 = inlined_call_operand.hbm [shape: f32[128,128], index: 1, kind: input, shape index: {}]
  %s2 = inlined_call_operand.vmem [shape: f32[1,128], index: 2, kind: input, shape index: {}]
  %s3 = inlined_call_operand.hbm [shape: f32[8,128], index: 3, kind: output, shape index: {}]
  %s4 = sld [smem:[#allocation0]]
  $region30: #{tpu_custom_call.1} parent=0
    _
  %s6 = ssub.s32 1, %s4
  %s7 = scalar_select 0, %s6, %s4
  $region1: #{tpu_custom_call.1} parent=0
    #allocation2 [shape = 'u8[4096]{0}', space=vmem, size = 0x1000, scoped, tag = 'input window, operand 0, single buffered']
    #allocation3 [shape = 's32[1]{0}', space=sflag, size = 0x4, scoped, tag = 'scoped memory for tpu_custom_call.1']
    #allocation4 [shape = 's32[1]{0}', space=sflag, size = 0x4, scoped, tag = 'scoped memory for tpu_custom_call.1']
    #allocation5 [shape = 'u8[65536]{0}', space=vmem, size = 0x10000, scoped, tag = 'input window, operand 1, single buffered']
    #allocation6 [shape = 's32[1]{0}', space=sflag, size = 0x4, scoped, tag = 'scoped memory for tpu_custom_call.1']
    #allocation7 [shape = 'u8[4096]{0}', space=vmem, size = 0x1000, scoped, tag = 'output window, operand 0, single buffered']
    %8 = vsyncpa [#allocation3], 0
    %9 = vsyncpa [#allocation6], 0
    %10 = vsyncpa [#allocation4], 0
    // Predicated region
    $region2: #{tpu_custom_call.1} parent=1 // pred_check
      _
    $region3: #{tpu_custom_call.1} parent=1 // pred_check_branch
      %12 = sbr.rel (0) target = $region5
    $region4: #{tpu_custom_call.1} parent=1 // pred_region
      %s14 = ssub.s32 128, 128
      %15 = vsyncadd [#allocation3], %s14
      %s17 = sshll.u32 [#allocation2], 4
      %s18 = int_to_ptr.vmem [resolvable:$true] %s17
      %20 = dma.hbm_to_vmem [thread:$0]  %s0, 128, %s18, [#allocation3]
    $region5: #{tpu_custom_call.1} parent=1 // pred_fallthru
      _
    // Predicated region
    $region6: #{tpu_custom_call.1} parent=1 // pred_check
      _
    $region7: #{tpu_custom_call.1} parent=1 // pred_check_branch
      %22 = sbr.rel (0) target = $region9
    $region8: #{tpu_custom_call.1} parent=1 // pred_region
      %s24 = ssub.s32 2048, 2048
      %25 = vsyncadd [#allocation6], %s24
      %s26 = sshll.u32 [#allocation5], 4
      %s27 = int_to_ptr.vmem [resolvable:$true] %s26
      %32 = dma.hbm_to_vmem [thread:$0]  %s1, 2048, %s27, [#allocation6], 128, 128, 8
    $region9: #{tpu_custom_call.1} parent=1 // pred_fallthru
      _
    // Predicated region
    $region10: #{tpu_custom_call.1} parent=1 // pred_check
      _
    $region11: #{tpu_custom_call.1} parent=1 // pred_check_branch
      %34 = sbr.rel (0) target = $region13
    $region12: #{tpu_custom_call.1} parent=1 // pred_region
      _
    $region13: #{tpu_custom_call.1} parent=1 // pred_fallthru
      _
    // Predicated region
    $region14: #{tpu_custom_call.1} parent=1 // pred_check
      _
    $region15: #{tpu_custom_call.1} parent=1 // pred_check_branch
      %36 = sbr.rel (0) target = $region17
    $region16: #{tpu_custom_call.1} parent=1 // pred_region
      %37 = dma.done [#allocation3], 128
    $region17: #{tpu_custom_call.1} parent=1 // pred_fallthru
      _
    // Predicated region
    $region18: #{tpu_custom_call.1} parent=1 // pred_check
      _
    $region19: #{tpu_custom_call.1} parent=1 // pred_check_branch
      %39 = sbr.rel (0) target = $region21
    $region20: #{tpu_custom_call.1} parent=1 // pred_region
      %40 = dma.done [#allocation6], 2048
    $region21: #{tpu_custom_call.1} parent=1 // pred_fallthru
      _
    %v41 = vld [vmem:[#allocation2] sm:$0xff]
    %v42 = vld [vmem:[#allocation5] sm:$0xff]
    %v43 = vld [vmem:[#allocation5 + $0x8] sm:$0xff]
    %v44 = vld [vmem:[#allocation5 + $0x10] sm:$0xff]
    %v45 = vld [vmem:[#allocation5 + $0x18] sm:$0xff]
    %v46 = vld [vmem:[#allocation5 + $0x20] sm:$0xff]
    %v47 = vld [vmem:[#allocation5 + $0x28] sm:$0xff]
    %v48 = vld [vmem:[#allocation5 + $0x30] sm:$0xff]
    %v49 = vld [vmem:[#allocation5 + $0x38] sm:$0xff]
    %v50 = vld [vmem:[#allocation5 + $0x40] sm:$0xff]
    %v51 = vld [vmem:[#allocation5 + $0x48] sm:$0xff]
    %v52 = vld [vmem:[#allocation5 + $0x50] sm:$0xff]
    %v53 = vld [vmem:[#allocation5 + $0x58] sm:$0xff]
    %v54 = vld [vmem:[#allocation5 + $0x60] sm:$0xff]
    %v55 = vld [vmem:[#allocation5 + $0x68] sm:$0xff]
    %v56 = vld [vmem:[#allocation5 + $0x70] sm:$0xff]
    %v57 = vld [vmem:[#allocation5 + $0x78] sm:$0xff]
    %58 = vmatprep.subr.mxu0 0.0
    %59 = vmatpush1.msra.mxu0 %v42
    %60 = vmatprep.subr.mxu0 0.0
    %61 = vmatpush1.msra.mxu0 %v43
    %62 = vmatprep.subr.mxu0 0.0
    %63 = vmatpush1.msra.mxu0 %v44
    %64 = vmatprep.subr.mxu0 0.0
    %65 = vmatpush1.msra.mxu0 %v45
    %66 = vmatprep.subr.mxu0 0.0
    %67 = vmatpush1.msra.mxu0 %v46
    %68 = vmatprep.subr.mxu0 0.0
    %69 = vmatpush1.msra.mxu0 %v47
    %70 = vmatprep.subr.mxu0 0.0
    %71 = vmatpush1.msra.mxu0 %v48
    %72 = vmatprep.subr.mxu0 0.0
    %73 = vmatpush1.msra.mxu0 %v49
    %74 = vmatprep.subr.mxu0 0.0
    %75 = vmatpush1.msra.mxu0 %v50
    %76 = vmatprep.subr.mxu0 0.0
    %77 = vmatpush1.msra.mxu0 %v51
    %78 = vmatprep.subr.mxu0 0.0
    %79 = vmatpush1.msra.mxu0 %v52
    %80 = vmatprep.subr.mxu0 0.0
    %81 = vmatpush1.msra.mxu0 %v53
    %82 = vmatprep.subr.mxu0 0.0
    %83 = vmatpush1.msra.mxu0 %v54
    %84 = vmatprep.subr.mxu0 0.0
    %85 = vmatpush1.msra.mxu0 %v55
    %86 = vmatprep.subr.mxu0 0.0
    %87 = vmatpush1.msra.mxu0 %v56
    %88 = vmatprep.subr.mxu0 0.0
    %89 = vmatpush1.msra.mxu0 %v57
    %90 = vmatprep.subr.mxu0 0.0
    %91 = vmatpush1.msra.mxu0 0.0
    %92 = vmatprep.subr.mxu0 0.0
    %93 = vmatpush1.msra.mxu0 0.0
    %94 = vmatprep.subr.mxu0 0.0
    %95 = vmatpush1.msra.mxu0 0.0
    %96 = vmatprep.subr.mxu0 0.0
    %97 = vmatpush1.msra.mxu0 0.0
    %98 = vmatprep.subr.mxu0 0.0
    %99 = vmatpush1.msra.mxu0 0.0
    %100 = vmatprep.subr.mxu0 0.0
    %101 = vmatpush1.msra.mxu0 0.0
    %102 = vmatprep.subr.mxu0 0.0
    %103 = vmatpush1.msra.mxu0 0.0
    %104 = vmatprep.subr.mxu0 0.0
    %105 = vmatpush1.msra.mxu0 0.0
    %106 = vmatprep.subr.mxu0 0.0
    %107 = vmatpush1.msra.mxu0 0.0
    %108 = vmatprep.subr.mxu0 0.0
    %109 = vmatpush1.msra.mxu0 0.0
    %110 = vmatprep.subr.mxu0 0.0
    %111 = vmatpush1.msra.mxu0 0.0
    %112 = vmatprep.subr.mxu0 0.0
    %113 = vmatpush1.msra.mxu0 0.0
    %114 = vmatprep.subr.mxu0 0.0
    %115 = vmatpush1.msra.mxu0 0.0
    %116 = vmatprep.subr.mxu0 0.0
    %117 = vmatpush1.msra.mxu0 0.0
    %118 = vmatprep.subr.mxu0 0.0
    %119 = vmatpush1.msra.mxu0 0.0
    %120 = vmatprep.subr.mxu0 0.0
    %121 = vmatpush1.msra.mxu0 0.0
    %122 = vmatprep.mubr.f32.mxu0 0.0
    %123 = vmatmul.mubr.f32.gmra.mrb[0].mxu0 %v41
    %v124 = vpop.f32.mrb[0].mxu0
    %v125 = vadd.f32 0.0, %v124
    %v126 = vpop.f32.mrb[0].mxu0
    %127 = vdwg.mxu0
    %v128 = vmul.f32 %v125, 0.0025
    %v129 = vld [vmem:[%s2] sm:$0x1]
    %v131 = vlaneseq
    %v132 = vshrl.u32 %v131, 7
    %v133 = vsub.s32 0, %v132
    %v134 = vrot.slane %v129, %v133
    %v136 = vadd.f32 %v128, %v134
    %vm137 = vcmp.ge.f32.partialorder %v136, 0.0
    %v138 = vmul.f32 %v136, 0.2
    %v139 = vsel %vm137, %v136, %v138
    %140 = vst [vmem:[#allocation7] sm:$0xff] %v139
    // Predicated region
    $region22: #{tpu_custom_call.1} parent=1 // pred_check
      _
    $region23: #{tpu_custom_call.1} parent=1 // pred_check_branch
      %142 = sbr.rel (0) target = $region25
    $region24: #{tpu_custom_call.1} parent=1 // pred_region
      %s144 = ssub.s32 128, 128
      %145 = vsyncadd [#allocation4], %s144
      %s147 = sshll.u32 [#allocation7], 4
      %s148 = int_to_ptr.vmem [resolvable:$true] %s147
      %150 = dma.vmem_to_hbm [thread:$0]  %s148, 128, %s3, [#allocation4]
    $region25: #{tpu_custom_call.1} parent=1 // pred_fallthru
      _
    // Predicated region
    $region26: #{tpu_custom_call.1} parent=1 // pred_check
      _
    $region27: #{tpu_custom_call.1} parent=1 // pred_check_branch
      %152 = sbr.rel (0) target = $region29
    $region28: #{tpu_custom_call.1} parent=1 // pred_region
      %153 = dma.done [#allocation4], 128
    $region29: #{tpu_custom_call.1} parent=1 // pred_fallthru
      _
    %154 = vsyncpa [#allocation3], 1
    %155 = vsyncpa [#allocation6], 1
    %156 = vsyncpa [#allocation4], 1

</llo_original>
